<compile_context>
chip_gen: v7x
topology: tpu7x:2x2x1
jax: 0.10.0
libtpu: 0.0.40
codegen_flags: <defaults>
</compile_context>

<pallas_src>
import math

import jax
import jax.numpy as jnp
from jax import lax
from jax.experimental import pallas as pl
from jax.experimental.pallas import tpu as pltpu


def _round_up(a: int, b: int) -> int:
    return ((a + b - 1) // b) * b


def rbf_kernel(x_ref, c_ref, cc_ref, scale_ref, o_ref):
    # x_ref:     (TN, Dp)   rows of (padded) input
    # c_ref:     (TO, Dp)   tile of (padded) centres
    # cc_ref:    (1,  TO)   precomputed ||c||^2 per centre (hoisted)
    # scale_ref: (1,  TO)   precomputed -0.5 * sigma^2 per centre (hoisted)
    # o_ref:     (TN, TO)
    x = x_ref[...].astype(jnp.float32)
    c = c_ref[...].astype(jnp.float32)

    xx = jnp.sum(x * x, axis=-1, keepdims=True)                        # (TN, 1)
    # Contract both operands on their last (lane) axis -> MXU, no c.T relayout.
    xc = lax.dot_general(
        x, c,
        dimension_numbers=(((1,), (1,)), ((), ())),
        preferred_element_type=jnp.float32)                            # (TN, TO)
    sqd = jnp.maximum(xx + cc_ref[...] - 2.0 * xc, 0.0)                # (TN, TO)

    # exp(-0.5 * (sqrt(sqd) * sigma)^2) == exp(sqd * (-0.5 * sigma^2))
    o_ref[...] = jnp.exp(sqd * scale_ref[...]).astype(o_ref.dtype)


def rbf_layer(x, centres, sigmas):
    """x: (1, N, D) or (N, D); centres: (O, D); sigmas: (O,). Returns (1, N, O)."""
    if x.ndim == 3:
        x = x[0]
    N, D = x.shape
    O = centres.shape[0]
    out_dtype = x.dtype

    # MXU-shaped tiles; pad instead of asserting divisibility.
    tile_n = 256 if N > 256 else _round_up(max(N, 1), 8)
    tile_o = 256 if O > 128 else 128
    n_pad = _round_up(N, tile_n)
    o_pad = _round_up(O, tile_o)
    d_pad = _round_up(D, 128)

    xf = x.astype(jnp.float32)
    cf = centres.astype(jnp.float32)
    sf = sigmas.astype(jnp.float32)

    # Zero padding is exact for the distance expansion (adds 0 to dots/norms).
    x_p = jnp.zeros((n_pad, d_pad), jnp.float32).at[:N, :D].set(xf)
    c_p = jnp.zeros((o_pad, d_pad), jnp.float32).at[:O, :D].set(cf)

    # Hoisted centre-side work: computed once, not once per grid step.
    cc = jnp.sum(c_p * c_p, axis=-1).reshape(1, o_pad)                 # ||c||^2
    scale = jnp.zeros((1, o_pad), jnp.float32).at[0, :O].set(-0.5 * sf * sf)

    grid = (n_pad // tile_n, o_pad // tile_o)

    cost = pl.CostEstimate(
        flops=2 * n_pad * o_pad * d_pad + 5 * n_pad * o_pad,
        transcendentals=n_pad * o_pad,
        bytes_accessed=4 * (x_p.size + c_p.size + cc.size + scale.size
                            + n_pad * o_pad),
    )

    out = pl.pallas_call(
        rbf_kernel,
        out_shape=jax.ShapeDtypeStruct((n_pad, o_pad), jnp.float32),
        grid_spec=pltpu.PrefetchScalarGridSpec(
            num_scalar_prefetch=0,
            grid=grid,
            in_specs=[
                pl.BlockSpec((tile_n, d_pad), lambda i, j: (i, 0)),   # x rows
                pl.BlockSpec((tile_o, d_pad), lambda i, j: (j, 0)),   # centres
                pl.BlockSpec((1, tile_o),     lambda i, j: (0, j)),   # ||c||^2
                pl.BlockSpec((1, tile_o),     lambda i, j: (0, j)),   # -0.5*sig^2
            ],
            out_specs=pl.BlockSpec((tile_n, tile_o), lambda i, j: (i, j)),
        ),
        compiler_params=pltpu.CompilerParams(
            dimension_semantics=("parallel", "parallel")),
        cost_estimate=cost,
    )(x_p, c_p, cc, scale)

    return out[:N, :O].astype(out_dtype)[None, ...]


if __name__ == "__main__":
    in_features = 32
    out_features = 64
    N = 16
    omega_0 = 10.0

    key = jax.random.PRNGKey(0)
    k_x, k_c = jax.random.split(key)

    # Deterministic parameter init (mirrors reset_parameters):
    #   centres ~ U(-1, 1), sigmas = omega_0.
    centres = jax.random.uniform(
        k_c, (out_features, in_features), jnp.float32, minval=-1.0, maxval=1.0)
    sigmas = jnp.full((out_features,), omega_0, dtype=jnp.float32)
    # freq = pi * ones((1, out_features)) is a parameter but unused in forward.
    freq = math.pi * jnp.ones((1, out_features), dtype=jnp.float32)  # noqa: F841

    x = jax.random.normal(k_x, (1, N, in_features), dtype=jnp.float32)

    out = rbf_layer(x, centres, sigmas)
    out = jax.block_until_ready(out)

    # Pure-JAX reference (direct broadcasted form, as in the PyTorch code).
    xe = x[0][:, None, :]                       # (N, 1, D)
    ce = centres[None, :, :]                    # (1, O, D)
    dist_ref = jnp.sqrt(jnp.sum((xe - ce) ** 2, axis=-1)) * sigmas[None, :]
    ref = jnp.exp(-0.5 * dist_ref ** 2)[None, ...]

    assert out.shape == (1, N, out_features)
    assert jnp.allclose(out, ref, atol=1e-5, rtol=1e-5)
    print("KERNEL_OK")
</pallas_src>

<mosaic_0001>
module attributes {stable_mosaic.version = 11 : i64} {
  func.func @rbf_kernel(%arg0: i32, %arg1: i32, %arg2: memref<16x128xf32, #tpu.memory_space<vmem>>, %arg3: memref<128x128xf32, #tpu.memory_space<vmem>>, %arg4: memref<1x128xf32, #tpu.memory_space<vmem>>, %arg5: memref<1x128xf32, #tpu.memory_space<vmem>>, %arg6: memref<16x128xf32, #tpu.memory_space<vmem>>) attributes {dimension_semantics = [#tpu.dimension_semantics<parallel>, #tpu.dimension_semantics<parallel>], iteration_bounds = array<i64: 1, 1>, scalar_prefetch = 0 : i64, scratch_operands = 0 : i64, tpu.core_type = #tpu.core_type<tc>, window_params = [{transform_indices = @transform_0, window_bounds = array<i64: 16, 128>}, {transform_indices = @transform_1, window_bounds = array<i64: 128, 128>}, {transform_indices = @transform_2, window_bounds = array<i64: 1, 128>}, {transform_indices = @transform_3, window_bounds = array<i64: 1, 128>}, {transform_indices = @transform_4, window_bounds = array<i64: 16, 128>}]} {
    %c0 = arith.constant 0 : index
    %c0_0 = arith.constant 0 : index
    %0 = vector.load %arg2[%c0, %c0_0] : memref<16x128xf32, #tpu.memory_space<vmem>>, vector<16x128xf32>
    %c0_1 = arith.constant 0 : index
    %c0_2 = arith.constant 0 : index
    %1 = vector.load %arg3[%c0_1, %c0_2] : memref<128x128xf32, #tpu.memory_space<vmem>>, vector<128x128xf32>
    %2 = arith.mulf %0, %0 : vector<16x128xf32>
    %cst = arith.constant dense<0.000000e+00> : vector<16xf32>
    %3 = vector.multi_reduction <add>, %2, %cst [1] : vector<16x128xf32> to vector<16xf32>
    %4 = vector.shape_cast %3 : vector<16xf32> to vector<16x1xf32>
    %cst_3 = arith.constant dense<0.000000e+00> : vector<16x128xf32>
    %5 = tpu.matmul %0, %1, %cst_3 {dimension_numbers = #tpu.dot_dimension_numbers<[1], [1], [0], [0], [0, 0, 1, 0], [], []>} : vector<16x128xf32>, vector<128x128xf32>, vector<16x128xf32> -> vector<16x128xf32>
    %c0_4 = arith.constant 0 : index
    %c0_5 = arith.constant 0 : index
    %6 = vector.load %arg4[%c0_4, %c0_5] : memref<1x128xf32, #tpu.memory_space<vmem>>, vector<1x128xf32>
    %7 = vector.broadcast %4 : vector<16x1xf32> to vector<16x128xf32>
    %8 = vector.broadcast %6 : vector<1x128xf32> to vector<16x128xf32>
    %9 = arith.addf %7, %8 : vector<16x128xf32>
    %cst_6 = arith.constant 2.000000e+00 : f32
    %10 = vector.broadcast %cst_6 : f32 to vector<16x128xf32>
    %11 = arith.mulf %10, %5 : vector<16x128xf32>
    %12 = arith.subf %9, %11 : vector<16x128xf32>
    %cst_7 = arith.constant 0.000000e+00 : f32
    %13 = vector.broadcast %cst_7 : f32 to vector<16x128xf32>
    %14 = arith.maximumf %12, %13 : vector<16x128xf32>
    %c0_8 = arith.constant 0 : index
    %c0_9 = arith.constant 0 : index
    %15 = vector.load %arg5[%c0_8, %c0_9] : memref<1x128xf32, #tpu.memory_space<vmem>>, vector<1x128xf32>
    %16 = vector.broadcast %15 : vector<1x128xf32> to vector<16x128xf32>
    %17 = arith.mulf %14, %16 : vector<16x128xf32>
    %18 = math.exp %17 : vector<16x128xf32>
    %c0_10 = arith.constant 0 : index
    %c0_11 = arith.constant 0 : index
    %19 = vector.load %arg6[%c0_10, %c0_11] : memref<16x128xf32, #tpu.memory_space<vmem>>, vector<16x128xf32>
    tpu.vector_store %arg6[%c0_10, %c0_11], %18 {strides = array<i32>} : memref<16x128xf32, #tpu.memory_space<vmem>>, vector<16x128xf32>,
    return
  }
  func.func @transform_0(%arg0: i32, %arg1: i32) -> (i32, i32) {
    %c0_i32 = arith.constant 0 : i32
    %c0_i32_0 = arith.constant 0 : i32
    return %arg0, %c0_i32 : i32, i32
  }
  func.func @transform_1(%arg0: i32, %arg1: i32) -> (i32, i32) {
    %c0_i32 = arith.constant 0 : i32
    %c0_i32_0 = arith.constant 0 : i32
    return %arg1, %c0_i32 : i32, i32
  }
  func.func @transform_2(%arg0: i32, %arg1: i32) -> (i32, i32) {
    %c0_i32 = arith.constant 0 : i32
    %c0_i32_0 = arith.constant 0 : i32
    return %c0_i32, %arg1 : i32, i32
  }
  func.func @transform_3(%arg0: i32, %arg1: i32) -> (i32, i32) {
    %c0_i32 = arith.constant 0 : i32
    %c0_i32_0 = arith.constant 0 : i32
    return %c0_i32, %arg1 : i32, i32
  }
  func.func @transform_4(%arg0: i32, %arg1: i32) -> (i32, i32) {
    %c0_i32 = arith.constant 0 : i32
    return %arg0, %arg1 : i32, i32
  }
}

</mosaic_0001>

<llo_original>
// kernel: tpu_custom_call.1
$region0: #{tpu_custom_call.1}
  #allocation0 [shape = 'u32[]', space=smem, size = 0x4, offset = 0x4, fixed_abs, tag = 'smem constant byte address 0x4 - core index']
  #allocation1 [shape = 'u32[144,128]{1,0:T(1,128)}', space=vmem, size = 0x12000, scoped, tag = 'internal scratch']
  %s0 = inlined_call_operand.hbm [shape: f32[16,128], index: 0, kind: input, shape index: {}]
  %s1 = inlined_call_operand.hbm [shape: f32[128,128], index: 1, kind: input, shape index: {}]
  %s2 = inlined_call_operand.vmem [shape: f32[1,128], index: 2, kind: input, shape index: {}]
  %s3 = inlined_call_operand.vmem [shape: f32[1,128], index: 3, kind: input, shape index: {}]
  %s4 = inlined_call_operand.hbm [shape: f32[16,128], index: 4, kind: output, shape index: {}]
  %s5 = sld [smem:[#allocation0]]
  $region34: #{tpu_custom_call.1} parent=0
    _
  %s7 = ssub.s32 1, %s5
  %s8 = scalar_select 0, %s7, %s5
  $region1: #{tpu_custom_call.1} parent=0
    #allocation2 [shape = 'u8[8192]{0}', space=vmem, size = 0x2000, scoped, tag = 'input window, operand 0, single buffered']
    #allocation3 [shape = 's32[1]{0}', space=sflag, size = 0x4, scoped, tag = 'scoped memory for tpu_custom_call.1']
    #allocation4 [shape = 's32[1]{0}', space=sflag, size = 0x4, scoped, tag = 'scoped memory for tpu_custom_call.1']
    #allocation5 [shape = 'u8[65536]{0}', space=vmem, size = 0x10000, scoped, tag = 'input window, operand 1, single buffered']
    #allocation6 [shape = 's32[1]{0}', space=sflag, size = 0x4, scoped, tag = 'scoped memory for tpu_custom_call.1']
    #allocation7 [shape = 'u8[8192]{0}', space=vmem, size = 0x2000, scoped, tag = 'output window, operand 0, single buffered']
    %9 = vsyncpa [#allocation3], 0
    %10 = vsyncpa [#allocation6], 0
    %11 = vsyncpa [#allocation4], 0
    // Predicated region
    $region2: #{tpu_custom_call.1} parent=1 // pred_check
      _
    $region3: #{tpu_custom_call.1} parent=1 // pred_check_branch
      %13 = sbr.rel (0) target = $region5
    $region4: #{tpu_custom_call.1} parent=1 // pred_region
      %s15 = ssub.s32 256, 256
      %16 = vsyncadd [#allocation3], %s15
      %s17 = sshll.u32 [#allocation2], 4
      %s18 = int_to_ptr.vmem [resolvable:$true] %s17
      %23 = dma.hbm_to_vmem [thread:$0]  %s0, 256, %s18, [#allocation3], 128, 128, 8
    $region5: #{tpu_custom_call.1} parent=1 // pred_fallthru
      _
    // Predicated region
    $region6: #{tpu_custom_call.1} parent=1 // pred_check
      _
    $region7: #{tpu_custom_call.1} parent=1 // pred_check_branch
      %25 = sbr.rel (0) target = $region9
    $region8: #{tpu_custom_call.1} parent=1 // pred_region
      %s27 = ssub.s32 2048, 2048
      %28 = vsyncadd [#allocation6], %s27
      %s29 = sshll.u32 [#allocation5], 4
      %s30 = int_to_ptr.vmem [resolvable:$true] %s29
      %35 = dma.hbm_to_vmem [thread:$0]  %s1, 2048, %s30, [#allocation6], 128, 128, 8
    $region9: #{tpu_custom_call.1} parent=1 // pred_fallthru
      _
    // Predicated region
    $region10: #{tpu_custom_call.1} parent=1 // pred_check
      _
    $region11: #{tpu_custom_call.1} parent=1 // pred_check_branch
      %37 = sbr.rel (0) target = $region13
    $region12: #{tpu_custom_call.1} parent=1 // pred_region
      _
    $region13: #{tpu_custom_call.1} parent=1 // pred_fallthru
      _
    // Predicated region
    $region14: #{tpu_custom_call.1} parent=1 // pred_check
      _
    $region15: #{tpu_custom_call.1} parent=1 // pred_check_branch
      %39 = sbr.rel (0) target = $region17
    $region16: #{tpu_custom_call.1} parent=1 // pred_region
      _
    $region17: #{tpu_custom_call.1} parent=1 // pred_fallthru
      _
    // Predicated region
    $region18: #{tpu_custom_call.1} parent=1 // pred_check
      _
    $region19: #{tpu_custom_call.1} parent=1 // pred_check_branch
      %41 = sbr.rel (0) target = $region21
    $region20: #{tpu_custom_call.1} parent=1 // pred_region
      %42 = dma.done [#allocation3], 256
    $region21: #{tpu_custom_call.1} parent=1 // pred_fallthru
      _
    // Predicated region
    $region22: #{tpu_custom_call.1} parent=1 // pred_check
      _
    $region23: #{tpu_custom_call.1} parent=1 // pred_check_branch
      %44 = sbr.rel (0) target = $region25
    $region24: #{tpu_custom_call.1} parent=1 // pred_region
      %45 = dma.done [#allocation6], 2048
    $region25: #{tpu_custom_call.1} parent=1 // pred_fallthru
      _
    %v46 = vld [vmem:[#allocation2] sm:$0xff]
    %v47 = vld [vmem:[#allocation2 + $0x8] sm:$0xff]
    %v48 = vld [vmem:[#allocation5] sm:$0xff]
    %v49 = vld [vmem:[#allocation5 + $0x8] sm:$0xff]
    %v50 = vld [vmem:[#allocation5 + $0x10] sm:$0xff]
    %v51 = vld [vmem:[#allocation5 + $0x18] sm:$0xff]
    %v52 = vld [vmem:[#allocation5 + $0x20] sm:$0xff]
    %v53 = vld [vmem:[#allocation5 + $0x28] sm:$0xff]
    %v54 = vld [vmem:[#allocation5 + $0x30] sm:$0xff]
    %v55 = vld [vmem:[#allocation5 + $0x38] sm:$0xff]
    %v56 = vld [vmem:[#allocation5 + $0x40] sm:$0xff]
    %v57 = vld [vmem:[#allocation5 + $0x48] sm:$0xff]
    %v58 = vld [vmem:[#allocation5 + $0x50] sm:$0xff]
    %v59 = vld [vmem:[#allocation5 + $0x58] sm:$0xff]
    %v60 = vld [vmem:[#allocation5 + $0x60] sm:$0xff]
    %v61 = vld [vmem:[#allocation5 + $0x68] sm:$0xff]
    %v62 = vld [vmem:[#allocation5 + $0x70] sm:$0xff]
    %v63 = vld [vmem:[#allocation5 + $0x78] sm:$0xff]
    %v64 = vmul.f32 %v46, %v46
    %v65 = vmul.f32 %v47, %v47
    %66 = vadd.xlane.f32.xlu0 %v64
    %v67 = vpop.xlane.xlu0 %66
    %68 = vadd.xlane.f32.xlu0 %v65
    %v69 = vpop.xlane.xlu0 %68
    %70 = vmatprep.subr.mxu0 0.0
    %71 = vmatpush1.xpose.msra.mxu0 %v48
    %72 = vmatprep.subr.mxu0 0.0
    %73 = vmatpush1.xpose.msra.mxu0 %v49
    %74 = vmatprep.subr.mxu0 0.0
    %75 = vmatpush1.xpose.msra.mxu0 %v50
    %76 = vmatprep.subr.mxu0 0.0
    %77 = vmatpush1.xpose.msra.mxu0 %v51
    %78 = vmatprep.subr.mxu0 0.0
    %79 = vmatpush1.xpose.msra.mxu0 %v52
    %80 = vmatprep.subr.mxu0 0.0
    %81 = vmatpush1.xpose.msra.mxu0 %v53
    %82 = vmatprep.subr.mxu0 0.0
    %83 = vmatpush1.xpose.msra.mxu0 %v54
    %84 = vmatprep.subr.mxu0 0.0
    %85 = vmatpush1.xpose.msra.mxu0 %v55
    %86 = vmatprep.subr.mxu0 0.0
    %87 = vmatpush1.xpose.msra.mxu0 %v56
    %88 = vmatprep.subr.mxu0 0.0
    %89 = vmatpush1.xpose.msra.mxu0 %v57
    %90 = vmatprep.subr.mxu0 0.0
    %91 = vmatpush1.xpose.msra.mxu0 %v58
    %92 = vmatprep.subr.mxu0 0.0
    %93 = vmatpush1.xpose.msra.mxu0 %v59
    %94 = vmatprep.subr.mxu0 0.0
    %95 = vmatpush1.xpose.msra.mxu0 %v60
    %96 = vmatprep.subr.mxu0 0.0
    %97 = vmatpush1.xpose.msra.mxu0 %v61
    %98 = vmatprep.subr.mxu0 0.0
    %99 = vmatpush1.xpose.msra.mxu0 %v62
    %100 = vmatprep.subr.mxu0 0.0
    %101 = vmatpush1.xpose.msra.mxu0 %v63
    %102 = vmatprep.subr.mxu0 0.0
    %103 = vmatpush1.xpose.msra.mxu0 0.0
    %104 = vmatprep.subr.mxu0 0.0
    %105 = vmatpush1.xpose.msra.mxu0 0.0
    %106 = vmatprep.subr.mxu0 0.0
    %107 = vmatpush1.xpose.msra.mxu0 0.0
    %108 = vmatprep.subr.mxu0 0.0
    %109 = vmatpush1.xpose.msra.mxu0 0.0
    %110 = vmatprep.subr.mxu0 0.0
    %111 = vmatpush1.xpose.msra.mxu0 0.0
    %112 = vmatprep.subr.mxu0 0.0
    %113 = vmatpush1.xpose.msra.mxu0 0.0
    %114 = vmatprep.subr.mxu0 0.0
    %115 = vmatpush1.xpose.msra.mxu0 0.0
    %116 = vmatprep.subr.mxu0 0.0
    %117 = vmatpush1.xpose.msra.mxu0 0.0
    %118 = vmatprep.subr.mxu0 0.0
    %119 = vmatpush1.xpose.msra.mxu0 0.0
    %120 = vmatprep.subr.mxu0 0.0
    %121 = vmatpush1.xpose.msra.mxu0 0.0
    %122 = vmatprep.subr.mxu0 0.0
    %123 = vmatpush1.xpose.msra.mxu0 0.0
    %124 = vmatprep.subr.mxu0 0.0
    %125 = vmatpush1.xpose.msra.mxu0 0.0
    %126 = vmatprep.subr.mxu0 0.0
    %127 = vmatpush1.xpose.msra.mxu0 0.0
    %128 = vmatprep.subr.mxu0 0.0
    %129 = vmatpush1.xpose.msra.mxu0 0.0
    %130 = vmatprep.subr.mxu0 0.0
    %131 = vmatpush1.xpose.msra.mxu0 0.0
    %132 = vmatprep.subr.mxu0 0.0
    %133 = vmatpush1.xpose.msra.mxu0 0.0
    %134 = vmatprep.mubr.f32.mxu0 0.0
    %135 = vmatmul.mubr.f32.gmra.mrb[0].mxu0 %v46
    %v136 = vpop.f32.mrb[0].mxu0
    %v137 = vadd.f32 0.0, %v136
    %v138 = vpop.f32.mrb[0].mxu0
    %139 = vmatprep.mubr.f32.mxu0 0.0
    %140 = vmatmul.mubr.f32.gmra.mrb[0].mxu0 %v47
    %v141 = vpop.f32.mrb[0].mxu0
    %v142 = vadd.f32 0.0, %v141
    %v143 = vpop.f32.mrb[0].mxu0
    %144 = vdwg.mxu0
    %v145 = vld [vmem:[%s2] sm:$0x1]
    %v147 = vlaneseq
    %v148 = vshrl.u32 %v147, 7
    %v149 = vsub.s32 0, %v148
    %v150 = vrot.slane %v145, %v149
    %v152 = vadd.f32 %v67, %v150
    %v153 = vadd.f32 %v69, %v150
    %v154 = vmul.f32 %v137, 2.0
    %v155 = vmul.f32 %v142, 2.0
    %v156 = vsub.f32 %v152, %v154
    %v157 = vsub.f32 %v153, %v155
    %v158 = vmax.f32 %v156, 0.0
    %v159 = vmax.f32 %v157, 0.0
    %v160 = vld [vmem:[%s3] sm:$0x1]
    %v162 = vlaneseq
    %v163 = vshrl.u32 %v162, 7
    %v164 = vsub.s32 0, %v163
    %v165 = vrot.slane %v160, %v164
    %v167 = vmul.f32 %v158, %v165
    %v168 = vmul.f32 %v159, %v165
    %v169 = vmul.f32 %v167, 1.442695
    %v170 = vpow.pop %v169
    %v171 = vmul.f32 %v168, 1.442695
    %v172 = vpow.pop %v171
    %173 = vst [vmem:[#allocation7] sm:$0xff] %v170
    %174 = vst [vmem:[#allocation7 + $0x8] sm:$0xff] %v172
    // Predicated region
    $region26: #{tpu_custom_call.1} parent=1 // pred_check
      _
    $region27: #{tpu_custom_call.1} parent=1 // pred_check_branch
      %176 = sbr.rel (0) target = $region29
    $region28: #{tpu_custom_call.1} parent=1 // pred_region
      %s178 = ssub.s32 256, 256
      %179 = vsyncadd [#allocation4], %s178
      %s180 = sshll.u32 [#allocation7], 4
      %s181 = int_to_ptr.vmem [resolvable:$true] %s180
      %186 = dma.vmem_to_hbm [thread:$0]  %s181, 256, %s4, [#allocation4], 128, 128, 8
    $region29: #{tpu_custom_call.1} parent=1 // pred_fallthru
      _
    // Predicated region
    $region30: #{tpu_custom_call.1} parent=1 // pred_check
      _
    $region31: #{tpu_custom_call.1} parent=1 // pred_check_branch
      %188 = sbr.rel (0) target = $region33
    $region32: #{tpu_custom_call.1} parent=1 // pred_region
      %189 = dma.done [#allocation4], 256
    $region33: #{tpu_custom_call.1} parent=1 // pred_fallthru
      _
    %190 = vsyncpa [#allocation3], 1
    %191 = vsyncpa [#allocation6], 1
    %192 = vsyncpa [#allocation4], 1

</llo_original>
